<compile_context>
chip_gen: v7x
topology: tpu7x:2x2x1
jax: 0.10.0
libtpu: 0.0.40
codegen_flags: <defaults>
</compile_context>

<pallas_src>
import math

import jax
import jax.numpy as jnp
from jax.experimental import pallas as pl
from jax.experimental.pallas import tpu as pltpu


def make_fixed_sinusoidal_table(C: int, d_model: int, dtype=jnp.float32) -> jax.Array:
    """Matches FixedEmbedding.__init__ (d_model assumed even, as in the reference)."""
    position = jnp.arange(C, dtype=jnp.float32)[:, None]                       # (C, 1)
    div_term = jnp.exp(
        jnp.arange(0, d_model, 2, dtype=jnp.float32) * -(math.log(10000.0) / d_model)
    )                                                                          # (d_model//2,)
    w = jnp.zeros((C, d_model), dtype=jnp.float32)
    w = w.at[:, 0::2].set(jnp.sin(position * div_term))
    w = w.at[:, 1::2].set(jnp.cos(position * div_term))
    return w.astype(dtype)


def _fixed_embedding_kernel(idx_ref, tab_ref, out_ref):
    # idx_ref: (tile, 1) int32 row indices for this grid step
    # tab_ref: (C, d_model) full fixed table (resident in VMEM across all steps)
    # out_ref: (tile, d_model) gathered rows (lane-dense: full d_model last dim)
    idx = idx_ref[...]                                             # (tile, 1)
    tile = out_ref.shape[0]
    C = tab_ref.shape[0]
    row_ids = jax.lax.broadcasted_iota(jnp.int32, (tile, C), 1)    # lanes = table row id
    onehot = (row_ids == idx).astype(tab_ref.dtype)                # (tile, C) one-hot
    out_ref[...] = jnp.dot(
        onehot, tab_ref[...], preferred_element_type=jnp.float32
    ).astype(out_ref.dtype)


def fixed_embedding(x: jax.Array, table: jax.Array, *, tile_n: int = 1024) -> jax.Array:
    """JAX/Pallas equivalent of FixedEmbedding.forward: table[x], gradient-stopped."""
    C, d_model = table.shape
    orig_shape = x.shape

    idx = x.reshape(-1).astype(jnp.int32)
    n = idx.shape[0]

    assert tile_n % 8 == 0, "tile_n must be a multiple of 8 (sublane constraint)"
    # One big block when everything fits a single step; otherwise large fixed tiles.
    tile = n if n <= tile_n else tile_n
    pad = (-n) % tile
    if pad:
        idx = jnp.pad(idx, (0, pad))          # pad with index 0 (valid row), sliced off below
    n_pad = n + pad

    idx2d = idx.reshape(n_pad, 1)             # (N, 1): one index per sublane row
    grid = (n_pad // tile,)

    out = pl.pallas_call(
        _fixed_embedding_kernel,
        out_shape=jax.ShapeDtypeStruct((n_pad, d_model), table.dtype),
        grid=grid,
        in_specs=[
            pl.BlockSpec((tile, 1), lambda i: (i, 0)),        # index tile
            pl.BlockSpec((C, d_model), lambda i: (0, 0)),     # full table, stays resident
        ],
        out_specs=pl.BlockSpec((tile, d_model), lambda i: (i, 0)),
        compiler_params=pltpu.CompilerParams(
            dimension_semantics=("parallel",),                # lets v7x shard tiles over 2 TCs
        ),
    )(idx2d, table)

    out = out[:n].reshape(*orig_shape, d_model)
    return jax.lax.stop_gradient(out)         # matches .detach() / requires_grad=False


if __name__ == "__main__":
    key = jax.random.PRNGKey(0)
    k_idx, _ = jax.random.split(key)

    # Small shapes consistent with the module: C categories, even d_model (lane-dense 128).
    C, d_model = 32, 128
    B, L = 2, 8

    table = make_fixed_sinusoidal_table(C, d_model)                 # fixed, non-trainable
    x = jax.random.randint(k_idx, (B, L), 0, C, dtype=jnp.int32)    # integer category ids

    out = fixed_embedding(x, table)
    out = jax.block_until_ready(out)

    # Reference: plain-JAX gather (== nn.Embedding lookup with the fixed table).
    ref = table[x]
    assert out.shape == (B, L, d_model), out.shape
    assert out.dtype == table.dtype
    assert jnp.allclose(out, ref, rtol=0.0, atol=1e-6)

    print("KERNEL_OK")
</pallas_src>

<mosaic_0001>
module attributes {stable_mosaic.version = 11 : i64} {
  func.func @_fixed_embedding_kernel(%arg0: i32, %arg1: memref<16x1xi32, #tpu.memory_space<vmem>>, %arg2: memref<32x128xf32, #tpu.memory_space<vmem>>, %arg3: memref<16x128xf32, #tpu.memory_space<vmem>>) attributes {dimension_semantics = [#tpu.dimension_semantics<parallel>], iteration_bounds = array<i64: 1>, scalar_prefetch = 0 : i64, scratch_operands = 0 : i64, tpu.core_type = #tpu.core_type<tc>, window_params = [{transform_indices = @transform_0, window_bounds = array<i64: 16, 1>}, {pipeline_mode = #tpu.pipeline_mode<synchronous>, transform_indices = @transform_1, window_bounds = array<i64: 32, 128>}, {transform_indices = @transform_2, window_bounds = array<i64: 16, 128>}]} {
    %c0 = arith.constant 0 : index
    %c0_0 = arith.constant 0 : index
    %0 = vector.load %arg1[%c0, %c0_0] : memref<16x1xi32, #tpu.memory_space<vmem>>, vector<16x1xi32>
    %1 = tpu.iota {dimensions = array<i32: 1>} : vector<16x32xi32>
    %2 = vector.broadcast %0 : vector<16x1xi32> to vector<16x32xi32>
    %3 = arith.cmpi eq, %1, %2 : vector<16x32xi32>
    %4 = arith.extui %3 : vector<16x32xi1> to vector<16x32xi32>
    %5 = arith.sitofp %4 : vector<16x32xi32> to vector<16x32xf32>
    %c0_1 = arith.constant 0 : index
    %c0_2 = arith.constant 0 : index
    %6 = vector.load %arg2[%c0_1, %c0_2] : memref<32x128xf32, #tpu.memory_space<vmem>>, vector<32x128xf32>
    %cst = arith.constant dense<0.000000e+00> : vector<16x128xf32>
    %7 = tpu.matmul %5, %6, %cst {dimension_numbers = #tpu.dot_dimension_numbers<[1], [0], [0], [1], [0, 0, 1, 1], [], []>} : vector<16x32xf32>, vector<32x128xf32>, vector<16x128xf32> -> vector<16x128xf32>
    %c0_3 = arith.constant 0 : index
    %c0_4 = arith.constant 0 : index
    %8 = vector.load %arg3[%c0_3, %c0_4] : memref<16x128xf32, #tpu.memory_space<vmem>>, vector<16x128xf32>
    tpu.vector_store %arg3[%c0_3, %c0_4], %7 {strides = array<i32>} : memref<16x128xf32, #tpu.memory_space<vmem>>, vector<16x128xf32>,
    return
  }
  func.func @transform_0(%arg0: i32) -> (i32, i32) {
    %c0_i32 = arith.constant 0 : i32
    %c0_i32_0 = arith.constant 0 : i32
    return %arg0, %c0_i32 : i32, i32
  }
  func.func @transform_1(%arg0: i32) -> (i32, i32) {
    %c0_i32 = arith.constant 0 : i32
    %c0_i32_0 = arith.constant 0 : i32
    %c0_i32_1 = arith.constant 0 : i32
    return %c0_i32, %c0_i32_0 : i32, i32
  }
  func.func @transform_2(%arg0: i32) -> (i32, i32) {
    %c0_i32 = arith.constant 0 : i32
    %c0_i32_0 = arith.constant 0 : i32
    return %arg0, %c0_i32 : i32, i32
  }
}

</mosaic_0001>

<llo_original>
// kernel: tpu_custom_call.1
$region0: #{tpu_custom_call.1}
  #allocation0 [shape = 'u32[]', space=smem, size = 0x4, offset = 0x4, fixed_abs, tag = 'smem constant byte address 0x4 - core index']
  #allocation1 [shape = 'u32[144,128]{1,0:T(1,128)}', space=vmem, size = 0x12000, scoped, tag = 'internal scratch']
  %s0 = inlined_call_operand.vmem [shape: s32[16,1], index: 0, kind: input, shape index: {}]
  %s1 = inlined_call_operand.hbm [shape: f32[32,128], index: 1, kind: input, shape index: {}]
  %s2 = inlined_call_operand.hbm [shape: f32[16,128], index: 2, kind: output, shape index: {}]
  %s3 = sld [smem:[#allocation0]]
  $region22: #{tpu_custom_call.1} parent=0
    _
  %s5 = ssub.s32 1, %s3
  %s6 = scalar_select 0, %s5, %s3
  $region1: #{tpu_custom_call.1} parent=0
    #allocation2 [shape = 'u8[16384]{0}', space=vmem, size = 0x4000, scoped, tag = 'input window, operand 1, single buffered']
    #allocation3 [shape = 's32[1]{0}', space=sflag, size = 0x4, scoped, tag = 'scoped memory for tpu_custom_call.1']
    #allocation4 [shape = 's32[1]{0}', space=sflag, size = 0x4, scoped, tag = 'scoped memory for tpu_custom_call.1']
    #allocation5 [shape = 'u8[8192]{0}', space=vmem, size = 0x2000, scoped, tag = 'output window, operand 0, single buffered']
    %7 = vsyncpa [#allocation3], 0
    %8 = vsyncpa [#allocation4], 0
    // Predicated region
    $region2: #{tpu_custom_call.1} parent=1 // pred_check
      _
    $region3: #{tpu_custom_call.1} parent=1 // pred_check_branch
      %10 = sbr.rel (0) target = $region5
    $region4: #{tpu_custom_call.1} parent=1 // pred_region
      _
    $region5: #{tpu_custom_call.1} parent=1 // pred_fallthru
      _
    // Predicated region
    $region6: #{tpu_custom_call.1} parent=1 // pred_check
      _
    $region7: #{tpu_custom_call.1} parent=1 // pred_check_branch
      %12 = sbr.rel (0) target = $region9
    $region8: #{tpu_custom_call.1} parent=1 // pred_region
      %s14 = ssub.s32 512, 512
      %15 = vsyncadd [#allocation3], %s14
      %s16 = sshll.u32 [#allocation2], 4
      %s17 = int_to_ptr.vmem [resolvable:$true] %s16
      %22 = dma.hbm_to_vmem [thread:$0]  %s1, 512, %s17, [#allocation3], 128, 128, 8
    $region9: #{tpu_custom_call.1} parent=1 // pred_fallthru
      _
    // Predicated region
    $region10: #{tpu_custom_call.1} parent=1 // pred_check
      _
    $region11: #{tpu_custom_call.1} parent=1 // pred_check_branch
      %24 = sbr.rel (0) target = $region13
    $region12: #{tpu_custom_call.1} parent=1 // pred_region
      %25 = dma.done [#allocation3], 512
    $region13: #{tpu_custom_call.1} parent=1 // pred_fallthru
      _
    %v26 = vld [vmem:[%s0] sm:$0xff]
    %v27 = vld [vmem:[%s0 + $0x8] sm:$0xff]
    %v28 = vlaneseq
    %v29 = vand.u32 %v28, 127
    %30 = vset.pattern.permute.xlu0 0
    %31 = vperm.xlu0 %30, %v26
    %v32 = vpop.permute.xlu0 %31
    %33 = vset.pattern.permute.xlu0 0
    %34 = vperm.xlu0 %33, %v27
    %v35 = vpop.permute.xlu0 %34
    %vm36 = vcmp.eq.s32.totalorder %v29, %v32
    %vm37 = vcmp.eq.s32.totalorder %v29, %v35
    %v38 = vsel %vm36, 1, 0
    %v39 = vsel %vm37, 1, 0
    %v40 = vcvt.s32.f32 %v38
    %v41 = vcvt.s32.f32 %v39
    %v42 = vld [vmem:[#allocation2] sm:$0xff]
    %v43 = vld [vmem:[#allocation2 + $0x8] sm:$0xff]
    %v44 = vld [vmem:[#allocation2 + $0x10] sm:$0xff]
    %v45 = vld [vmem:[#allocation2 + $0x18] sm:$0xff]
    %vm46 = vcmask 261120
    %v48 = vsel %vm46, %v40, 0
    %v51 = vsel %vm46, %v41, 0
    %53 = vmatprep.subr.mxu0 0.0
    %54 = vmatpush1.msra.mxu0 %v42
    %55 = vmatprep.subr.mxu0 0.0
    %56 = vmatpush1.msra.mxu0 %v43
    %57 = vmatprep.subr.mxu0 0.0
    %58 = vmatpush1.msra.mxu0 %v44
    %59 = vmatprep.subr.mxu0 0.0
    %60 = vmatpush1.msra.mxu0 %v45
    %61 = vmatprep.subr.mxu0 0.0
    %62 = vmatpush1.msra.mxu0 0.0
    %63 = vmatprep.subr.mxu0 0.0
    %64 = vmatpush1.msra.mxu0 0.0
    %65 = vmatprep.subr.mxu0 0.0
    %66 = vmatpush1.msra.mxu0 0.0
    %67 = vmatprep.subr.mxu0 0.0
    %68 = vmatpush1.msra.mxu0 0.0
    %69 = vmatprep.subr.mxu0 0.0
    %70 = vmatpush1.msra.mxu0 0.0
    %71 = vmatprep.subr.mxu0 0.0
    %72 = vmatpush1.msra.mxu0 0.0
    %73 = vmatprep.subr.mxu0 0.0
    %74 = vmatpush1.msra.mxu0 0.0
    %75 = vmatprep.subr.mxu0 0.0
    %76 = vmatpush1.msra.mxu0 0.0
    %77 = vmatprep.subr.mxu0 0.0
    %78 = vmatpush1.msra.mxu0 0.0
    %79 = vmatprep.subr.mxu0 0.0
    %80 = vmatpush1.msra.mxu0 0.0
    %81 = vmatprep.subr.mxu0 0.0
    %82 = vmatpush1.msra.mxu0 0.0
    %83 = vmatprep.subr.mxu0 0.0
    %84 = vmatpush1.msra.mxu0 0.0
    %85 = vmatprep.subr.mxu0 0.0
    %86 = vmatpush1.msra.mxu0 0.0
    %87 = vmatprep.subr.mxu0 0.0
    %88 = vmatpush1.msra.mxu0 0.0
    %89 = vmatprep.subr.mxu0 0.0
    %90 = vmatpush1.msra.mxu0 0.0
    %91 = vmatprep.subr.mxu0 0.0
    %92 = vmatpush1.msra.mxu0 0.0
    %93 = vmatprep.subr.mxu0 0.0
    %94 = vmatpush1.msra.mxu0 0.0
    %95 = vmatprep.subr.mxu0 0.0
    %96 = vmatpush1.msra.mxu0 0.0
    %97 = vmatprep.subr.mxu0 0.0
    %98 = vmatpush1.msra.mxu0 0.0
    %99 = vmatprep.subr.mxu0 0.0
    %100 = vmatpush1.msra.mxu0 0.0
    %101 = vmatprep.subr.mxu0 0.0
    %102 = vmatpush1.msra.mxu0 0.0
    %103 = vmatprep.subr.mxu0 0.0
    %104 = vmatpush1.msra.mxu0 0.0
    %105 = vmatprep.subr.mxu0 0.0
    %106 = vmatpush1.msra.mxu0 0.0
    %107 = vmatprep.subr.mxu0 0.0
    %108 = vmatpush1.msra.mxu0 0.0
    %109 = vmatprep.subr.mxu0 0.0
    %110 = vmatpush1.msra.mxu0 0.0
    %111 = vmatprep.subr.mxu0 0.0
    %112 = vmatpush1.msra.mxu0 0.0
    %113 = vmatprep.subr.mxu0 0.0
    %114 = vmatpush1.msra.mxu0 0.0
    %115 = vmatprep.subr.mxu0 0.0
    %116 = vmatpush1.msra.mxu0 0.0
    %117 = vmatprep.mubr.f32.mxu0 0.0
    %118 = vmatmul.mubr.f32.gmra.mrb[0].mxu0 %v48
    %v119 = vpop.f32.mrb[0].mxu0
    %v120 = vadd.f32 0.0, %v119
    %v121 = vpop.f32.mrb[0].mxu0
    %122 = vmatprep.mubr.f32.mxu0 0.0
    %123 = vmatmul.mubr.f32.gmra.mrb[0].mxu0 %v51
    %v124 = vpop.f32.mrb[0].mxu0
    %v125 = vadd.f32 0.0, %v124
    %v126 = vpop.f32.mrb[0].mxu0
    %127 = vdwg.mxu0
    %128 = vst [vmem:[#allocation5] sm:$0xff] %v120
    %129 = vst [vmem:[#allocation5 + $0x8] sm:$0xff] %v125
    // Predicated region
    $region14: #{tpu_custom_call.1} parent=1 // pred_check
      _
    $region15: #{tpu_custom_call.1} parent=1 // pred_check_branch
      %131 = sbr.rel (0) target = $region17
    $region16: #{tpu_custom_call.1} parent=1 // pred_region
      %s133 = ssub.s32 256, 256
      %134 = vsyncadd [#allocation4], %s133
      %s135 = sshll.u32 [#allocation5], 4
      %s136 = int_to_ptr.vmem [resolvable:$true] %s135
      %141 = dma.vmem_to_hbm [thread:$0]  %s136, 256, %s2, [#allocation4], 128, 128, 8
    $region17: #{tpu_custom_call.1} parent=1 // pred_fallthru
      _
    // Predicated region
    $region18: #{tpu_custom_call.1} parent=1 // pred_check
      _
    $region19: #{tpu_custom_call.1} parent=1 // pred_check_branch
      %143 = sbr.rel (0) target = $region21
    $region20: #{tpu_custom_call.1} parent=1 // pred_region
      %144 = dma.done [#allocation4], 256
    $region21: #{tpu_custom_call.1} parent=1 // pred_fallthru
      _
    %145 = vsyncpa [#allocation3], 1
    %146 = vsyncpa [#allocation4], 1

</llo_original>
